<compile_context>
chip_gen: v7x
topology: tpu7x:2x2x1
jax: 0.10.0
libtpu: 0.0.40
codegen_flags: <defaults>
</compile_context>

<pallas_src>
import jax
import jax.numpy as jnp
from jax.experimental import pallas as pl
from jax.experimental.pallas import tpu as pltpu

_LANE = 128
_SUBLANE = 8


def _cdiv(a: int, b: int) -> int:
    return (a + b - 1) // b


def _round_up(x: int, n: int) -> int:
    return _cdiv(x, n) * n


def _fused_linear_kernel(x_ref, w_ref, b_ref, o_ref):
    # Single MXU matmul + bias add, f32 accumulation.
    o_ref[...] = (
        jnp.dot(x_ref[...], w_ref[...], preferred_element_type=jnp.float32)
        + b_ref[...]
    ).astype(o_ref.dtype)


def projection_wrapper_forward(x, w1, b1, w2, b2, *, tm_max=8192):
    """ProjectionWrapper forward: projection(wrapped_module(x)).

    x : [batch, seq, hidden_in]
    w1: [hidden_mid, hidden_in], b1: [hidden_mid]   (torch Linear layout)
    w2: [hidden_out, hidden_mid], b2: [hidden_out]
    returns [batch, seq, hidden_out]
    """
    batch, seq, hidden_in = x.shape
    hidden_out = w2.shape[0]
    m = batch * seq

    # Collapse Linear -> Linear (no nonlinearity between them):
    #   h = (x @ W1^T + b1) @ W2^T + b2 = x @ (W2 @ W1)^T + (W2 @ b1 + b2)
    hp = jax.lax.Precision.HIGHEST
    w_eff_t = jnp.dot(w2, w1, precision=hp).T.astype(x.dtype)          # [in, out]
    b_eff = (jnp.dot(w2, b1, precision=hp) + b2).astype(jnp.float32)   # [out]

    x2d = x.reshape(m, hidden_in)

    # Lane packing: fold `pack` consecutive rows into one 128-lane row so both
    # loads and stores are fully lane-dense.  The reshape is contiguous/free.
    pack = 1
    if hidden_in < _LANE and _LANE % hidden_in == 0:
        cand = _LANE // hidden_in
        if m % cand == 0:
            pack = cand

    if pack > 1:
        x_k = x2d.reshape(m // pack, pack * hidden_in)
        eye = jnp.eye(pack, dtype=w_eff_t.dtype)
        w_k = jnp.kron(eye, w_eff_t)                     # blockdiag [p*in, p*out]
        b_k = jnp.tile(b_eff, pack).reshape(1, pack * hidden_out)
    else:
        # Fallback (m not divisible by pack): unpacked, but still collapsed and
        # with an unpadded (tm, hidden_out) output block (legal: equals full dim).
        x_k = x2d
        w_k = w_eff_t
        b_k = b_eff.reshape(1, hidden_out)

    m_rows, din_k = x_k.shape
    dout_k = w_k.shape[1]

    # Row tile: multiple of 8 sublanes; >= 2 grid steps whenever possible so
    # both v7x TensorCores are used; capped so double-buffered tiles fit the
    # scoped VMEM budget on every chip.
    if m_rows <= _SUBLANE:
        tm = m_rows                       # equals full dim -> always legal
    else:
        tm = min(_round_up(_cdiv(m_rows, 2), _SUBLANE), tm_max)
    grid_m = _cdiv(m_rows, tm)

    itemsize = jnp.dtype(x.dtype).itemsize
    flops = 2 * m_rows * din_k * dout_k
    bytes_accessed = (
        x_k.size * itemsize
        + m_rows * dout_k * itemsize
        + w_k.size * jnp.dtype(w_k.dtype).itemsize
        + b_k.size * jnp.dtype(b_k.dtype).itemsize
    )

    out_k = pl.pallas_call(
        _fused_linear_kernel,
        out_shape=jax.ShapeDtypeStruct((m_rows, dout_k), x.dtype),
        grid=(grid_m,),
        in_specs=[
            # activations: tiled along rows, auto-pipelined (double-buffered)
            pl.BlockSpec((tm, din_k), lambda i: (i, 0)),
            # collapsed weights / bias: constant block index -> VMEM resident
            pl.BlockSpec((din_k, dout_k), lambda i: (0, 0)),
            pl.BlockSpec((1, dout_k), lambda i: (0, 0)),
        ],
        out_specs=pl.BlockSpec((tm, dout_k), lambda i: (i, 0)),
        compiler_params=pltpu.CompilerParams(
            dimension_semantics=("parallel",),
            vmem_limit_bytes=40 * 1024 * 1024,
        ),
        cost_estimate=pl.CostEstimate(
            flops=flops, transcendentals=0, bytes_accessed=bytes_accessed),
    )(x_k, w_k, b_k)

    # Free contiguous reshapes back to the logical output shape.
    return out_k.reshape(batch, seq, hidden_out)


if __name__ == "__main__":
    batch, seq = 2, 8
    hidden_in, hidden_mid, hidden_out = 32, 64, 32

    key = jax.random.PRNGKey(0)
    kx, k1, k2, k3, k4 = jax.random.split(key, 5)

    x = jax.random.normal(kx, (batch, seq, hidden_in), dtype=jnp.float32)
    # deterministic parameter init (synthetic, torch-Linear-style scale)
    w1 = jax.random.uniform(k1, (hidden_mid, hidden_in), jnp.float32,
                            -1.0, 1.0) / jnp.sqrt(hidden_in)
    b1 = jax.random.uniform(k2, (hidden_mid,), jnp.float32,
                            -1.0, 1.0) / jnp.sqrt(hidden_in)
    w2 = jax.random.uniform(k3, (hidden_out, hidden_mid), jnp.float32,
                            -1.0, 1.0) / jnp.sqrt(hidden_mid)
    b2 = jax.random.uniform(k4, (hidden_out,), jnp.float32,
                            -1.0, 1.0) / jnp.sqrt(hidden_mid)

    out = projection_wrapper_forward(x, w1, b1, w2, b2)
    out = jax.block_until_ready(out)

    # pure-JAX reference of the original (chained) forward semantics
    hp = jax.lax.Precision.HIGHEST
    x2d = x.reshape(-1, hidden_in)
    y_ref = jnp.dot(x2d, w1.T, precision=hp) + b1
    ref = (jnp.dot(y_ref, w2.T, precision=hp) + b2).reshape(
        batch, seq, hidden_out)

    assert out.shape == (batch, seq, hidden_out)
    # Tolerance accommodates fp32-rounding differences from the algebraic
    # collapse and TPU matmul pass configuration; still catches any
    # structural error (wrong transpose / bias / layer) by a wide margin.
    assert jnp.allclose(out, ref, atol=5e-3, rtol=5e-3), float(
        jnp.max(jnp.abs(out - ref)))

    print("KERNEL_OK")
</pallas_src>

<mosaic_0001>
module attributes {stable_mosaic.version = 11 : i64} {
  func.func @_fused_linear_kernel(%arg0: i32, %arg1: memref<4x128xf32, #tpu.memory_space<vmem>>, %arg2: memref<128x128xf32, #tpu.memory_space<vmem>>, %arg3: memref<1x128xf32, #tpu.memory_space<vmem>>, %arg4: memref<4x128xf32, #tpu.memory_space<vmem>>) attributes {dimension_semantics = [#tpu.dimension_semantics<parallel>], iteration_bounds = array<i64: 1>, scalar_prefetch = 0 : i64, scratch_operands = 0 : i64, tpu.core_type = #tpu.core_type<tc>, window_params = [{transform_indices = @transform_0, window_bounds = array<i64: 4, 128>}, {pipeline_mode = #tpu.pipeline_mode<synchronous>, transform_indices = @transform_1, window_bounds = array<i64: 128, 128>}, {pipeline_mode = #tpu.pipeline_mode<synchronous>, transform_indices = @transform_2, window_bounds = array<i64: 1, 128>}, {transform_indices = @transform_3, window_bounds = array<i64: 4, 128>}]} {
    %c0 = arith.constant 0 : index
    %c0_0 = arith.constant 0 : index
    %0 = vector.load %arg1[%c0, %c0_0] : memref<4x128xf32, #tpu.memory_space<vmem>>, vector<4x128xf32>
    %c0_1 = arith.constant 0 : index
    %c0_2 = arith.constant 0 : index
    %1 = vector.load %arg2[%c0_1, %c0_2] : memref<128x128xf32, #tpu.memory_space<vmem>>, vector<128x128xf32>
    %cst = arith.constant dense<0.000000e+00> : vector<4x128xf32>
    %2 = tpu.matmul %0, %1, %cst {dimension_numbers = #tpu.dot_dimension_numbers<[1], [0], [0], [1], [0, 0, 1, 1], [], []>} : vector<4x128xf32>, vector<128x128xf32>, vector<4x128xf32> -> vector<4x128xf32>
    %c0_3 = arith.constant 0 : index
    %c0_4 = arith.constant 0 : index
    %3 = vector.load %arg3[%c0_3, %c0_4] : memref<1x128xf32, #tpu.memory_space<vmem>>, vector<1x128xf32>
    %4 = vector.broadcast %3 : vector<1x128xf32> to vector<4x128xf32>
    %5 = arith.addf %2, %4 : vector<4x128xf32>
    %c0_5 = arith.constant 0 : index
    %c0_6 = arith.constant 0 : index
    %6 = vector.load %arg4[%c0_5, %c0_6] : memref<4x128xf32, #tpu.memory_space<vmem>>, vector<4x128xf32>
    tpu.vector_store %arg4[%c0_5, %c0_6], %5 {strides = array<i32>} : memref<4x128xf32, #tpu.memory_space<vmem>>, vector<4x128xf32>,
    return
  }
  func.func @transform_0(%arg0: i32) -> (i32, i32) {
    %c0_i32 = arith.constant 0 : i32
    %c0_i32_0 = arith.constant 0 : i32
    return %arg0, %c0_i32 : i32, i32
  }
  func.func @transform_1(%arg0: i32) -> (i32, i32) {
    %c0_i32 = arith.constant 0 : i32
    %c0_i32_0 = arith.constant 0 : i32
    %c0_i32_1 = arith.constant 0 : i32
    return %c0_i32, %c0_i32_0 : i32, i32
  }
  func.func @transform_2(%arg0: i32) -> (i32, i32) {
    %c0_i32 = arith.constant 0 : i32
    %c0_i32_0 = arith.constant 0 : i32
    %c0_i32_1 = arith.constant 0 : i32
    return %c0_i32, %c0_i32_0 : i32, i32
  }
  func.func @transform_3(%arg0: i32) -> (i32, i32) {
    %c0_i32 = arith.constant 0 : i32
    %c0_i32_0 = arith.constant 0 : i32
    return %arg0, %c0_i32 : i32, i32
  }
}

</mosaic_0001>

<llo_original>
// kernel: tpu_custom_call.1
$region0: #{tpu_custom_call.1}
  #allocation0 [shape = 'u32[]', space=smem, size = 0x4, offset = 0x4, fixed_abs, tag = 'smem constant byte address 0x4 - core index']
  #allocation1 [shape = 'u32[144,128]{1,0:T(1,128)}', space=vmem, size = 0x12000, scoped, tag = 'internal scratch']
  %s0 = inlined_call_operand.hbm [shape: f32[4,128], index: 0, kind: input, shape index: {}]
  %s1 = inlined_call_operand.hbm [shape: f32[128,128], index: 1, kind: input, shape index: {}]
  %s2 = inlined_call_operand.vmem [shape: f32[1,128], index: 2, kind: input, shape index: {}]
  %s3 = inlined_call_operand.hbm [shape: f32[4,128], index: 3, kind: output, shape index: {}]
  %s4 = sld [smem:[#allocation0]]
  $region30: #{tpu_custom_call.1} parent=0
    _
  %s6 = ssub.s32 1, %s4
  %s7 = scalar_select 0, %s6, %s4
  $region1: #{tpu_custom_call.1} parent=0
    #allocation2 [shape = 'u8[2048]{0}', space=vmem, size = 0x800, scoped, tag = 'input window, operand 0, single buffered']
    #allocation3 [shape = 's32[1]{0}', space=sflag, size = 0x4, scoped, tag = 'scoped memory for tpu_custom_call.1']
    #allocation4 [shape = 's32[1]{0}', space=sflag, size = 0x4, scoped, tag = 'scoped memory for tpu_custom_call.1']
    #allocation5 [shape = 'u8[65536]{0}', space=vmem, size = 0x10000, scoped, tag = 'input window, operand 1, single buffered']
    #allocation6 [shape = 's32[1]{0}', space=sflag, size = 0x4, scoped, tag = 'scoped memory for tpu_custom_call.1']
    #allocation7 [shape = 'u8[2048]{0}', space=vmem, size = 0x800, scoped, tag = 'output window, operand 0, single buffered']
    %8 = vsyncpa [#allocation3], 0
    %9 = vsyncpa [#allocation6], 0
    %10 = vsyncpa [#allocation4], 0
    // Predicated region
    $region2: #{tpu_custom_call.1} parent=1 // pred_check
      _
    $region3: #{tpu_custom_call.1} parent=1 // pred_check_branch
      %12 = sbr.rel (0) target = $region5
    $region4: #{tpu_custom_call.1} parent=1 // pred_region
      %s14 = ssub.s32 64, 64
      %15 = vsyncadd [#allocation3], %s14
      %s17 = sshll.u32 [#allocation2], 4
      %s18 = int_to_ptr.vmem [resolvable:$true] %s17
      %20 = dma.hbm_to_vmem [thread:$0]  %s0, 64, %s18, [#allocation3]
    $region5: #{tpu_custom_call.1} parent=1 // pred_fallthru
      _
    // Predicated region
    $region6: #{tpu_custom_call.1} parent=1 // pred_check
      _
    $region7: #{tpu_custom_call.1} parent=1 // pred_check_branch
      %22 = sbr.rel (0) target = $region9
    $region8: #{tpu_custom_call.1} parent=1 // pred_region
      %s24 = ssub.s32 2048, 2048
      %25 = vsyncadd [#allocation6], %s24
      %s26 = sshll.u32 [#allocation5], 4
      %s27 = int_to_ptr.vmem [resolvable:$true] %s26
      %32 = dma.hbm_to_vmem [thread:$0]  %s1, 2048, %s27, [#allocation6], 128, 128, 8
    $region9: #{tpu_custom_call.1} parent=1 // pred_fallthru
      _
    // Predicated region
    $region10: #{tpu_custom_call.1} parent=1 // pred_check
      _
    $region11: #{tpu_custom_call.1} parent=1 // pred_check_branch
      %34 = sbr.rel (0) target = $region13
    $region12: #{tpu_custom_call.1} parent=1 // pred_region
      _
    $region13: #{tpu_custom_call.1} parent=1 // pred_fallthru
      _
    // Predicated region
    $region14: #{tpu_custom_call.1} parent=1 // pred_check
      _
    $region15: #{tpu_custom_call.1} parent=1 // pred_check_branch
      %36 = sbr.rel (0) target = $region17
    $region16: #{tpu_custom_call.1} parent=1 // pred_region
      %37 = dma.done [#allocation3], 64
    $region17: #{tpu_custom_call.1} parent=1 // pred_fallthru
      _
    // Predicated region
    $region18: #{tpu_custom_call.1} parent=1 // pred_check
      _
    $region19: #{tpu_custom_call.1} parent=1 // pred_check_branch
      %39 = sbr.rel (0) target = $region21
    $region20: #{tpu_custom_call.1} parent=1 // pred_region
      %40 = dma.done [#allocation6], 2048
    $region21: #{tpu_custom_call.1} parent=1 // pred_fallthru
      _
    %v41 = vld [vmem:[#allocation2] sm:$0xf]
    %v42 = vld [vmem:[#allocation5] sm:$0xff]
    %v43 = vld [vmem:[#allocation5 + $0x8] sm:$0xff]
    %v44 = vld [vmem:[#allocation5 + $0x10] sm:$0xff]
    %v45 = vld [vmem:[#allocation5 + $0x18] sm:$0xff]
    %v46 = vld [vmem:[#allocation5 + $0x20] sm:$0xff]
    %v47 = vld [vmem:[#allocation5 + $0x28] sm:$0xff]
    %v48 = vld [vmem:[#allocation5 + $0x30] sm:$0xff]
    %v49 = vld [vmem:[#allocation5 + $0x38] sm:$0xff]
    %v50 = vld [vmem:[#allocation5 + $0x40] sm:$0xff]
    %v51 = vld [vmem:[#allocation5 + $0x48] sm:$0xff]
    %v52 = vld [vmem:[#allocation5 + $0x50] sm:$0xff]
    %v53 = vld [vmem:[#allocation5 + $0x58] sm:$0xff]
    %v54 = vld [vmem:[#allocation5 + $0x60] sm:$0xff]
    %v55 = vld [vmem:[#allocation5 + $0x68] sm:$0xff]
    %v56 = vld [vmem:[#allocation5 + $0x70] sm:$0xff]
    %v57 = vld [vmem:[#allocation5 + $0x78] sm:$0xff]
    %v58 = vld [vmem:[%s2] sm:$0x1]
    %v60 = vlaneseq
    %v61 = vshrl.u32 %v60, 7
    %v62 = vsub.s32 0, %v61
    %v63 = vrot.slane %v58, %v62
    %65 = vmatprep.subr.mxu0 0.0
    %66 = vmatpush1.msra.mxu0 %v42
    %67 = vmatprep.subr.mxu0 0.0
    %68 = vmatpush1.msra.mxu0 %v43
    %69 = vmatprep.subr.mxu0 0.0
    %70 = vmatpush1.msra.mxu0 %v44
    %71 = vmatprep.subr.mxu0 0.0
    %72 = vmatpush1.msra.mxu0 %v45
    %73 = vmatprep.subr.mxu0 0.0
    %74 = vmatpush1.msra.mxu0 %v46
    %75 = vmatprep.subr.mxu0 0.0
    %76 = vmatpush1.msra.mxu0 %v47
    %77 = vmatprep.subr.mxu0 0.0
    %78 = vmatpush1.msra.mxu0 %v48
    %79 = vmatprep.subr.mxu0 0.0
    %80 = vmatpush1.msra.mxu0 %v49
    %81 = vmatprep.subr.mxu0 0.0
    %82 = vmatpush1.msra.mxu0 %v50
    %83 = vmatprep.subr.mxu0 0.0
    %84 = vmatpush1.msra.mxu0 %v51
    %85 = vmatprep.subr.mxu0 0.0
    %86 = vmatpush1.msra.mxu0 %v52
    %87 = vmatprep.subr.mxu0 0.0
    %88 = vmatpush1.msra.mxu0 %v53
    %89 = vmatprep.subr.mxu0 0.0
    %90 = vmatpush1.msra.mxu0 %v54
    %91 = vmatprep.subr.mxu0 0.0
    %92 = vmatpush1.msra.mxu0 %v55
    %93 = vmatprep.subr.mxu0 0.0
    %94 = vmatpush1.msra.mxu0 %v56
    %95 = vmatprep.subr.mxu0 0.0
    %96 = vmatpush1.msra.mxu0 %v57
    %97 = vmatprep.subr.mxu0 0.0
    %98 = vmatpush1.msra.mxu0 0.0
    %99 = vmatprep.subr.mxu0 0.0
    %100 = vmatpush1.msra.mxu0 0.0
    %101 = vmatprep.subr.mxu0 0.0
    %102 = vmatpush1.msra.mxu0 0.0
    %103 = vmatprep.subr.mxu0 0.0
    %104 = vmatpush1.msra.mxu0 0.0
    %105 = vmatprep.subr.mxu0 0.0
    %106 = vmatpush1.msra.mxu0 0.0
    %107 = vmatprep.subr.mxu0 0.0
    %108 = vmatpush1.msra.mxu0 0.0
    %109 = vmatprep.subr.mxu0 0.0
    %110 = vmatpush1.msra.mxu0 0.0
    %111 = vmatprep.subr.mxu0 0.0
    %112 = vmatpush1.msra.mxu0 0.0
    %113 = vmatprep.subr.mxu0 0.0
    %114 = vmatpush1.msra.mxu0 0.0
    %115 = vmatprep.subr.mxu0 0.0
    %116 = vmatpush1.msra.mxu0 0.0
    %117 = vmatprep.subr.mxu0 0.0
    %118 = vmatpush1.msra.mxu0 0.0
    %119 = vmatprep.subr.mxu0 0.0
    %120 = vmatpush1.msra.mxu0 0.0
    %121 = vmatprep.subr.mxu0 0.0
    %122 = vmatpush1.msra.mxu0 0.0
    %123 = vmatprep.subr.mxu0 0.0
    %124 = vmatpush1.msra.mxu0 0.0
    %125 = vmatprep.subr.mxu0 0.0
    %126 = vmatpush1.msra.mxu0 0.0
    %127 = vmatprep.subr.mxu0 0.0
    %128 = vmatpush1.msra.mxu0 0.0
    %129 = vmatprep.mubr.f32.mxu0 0.0
    %130 = vmatmul.mubr.f32.gmra.mrb[0].mxu0 %v41
    %v131 = vpop.f32.mrb[0].mxu0
    %v132 = vadd.f32 %v63, %v131
    %v133 = vpop.f32.mrb[0].mxu0
    %134 = vdwg.mxu0
    %135 = vst [vmem:[#allocation7] sm:$0xf] %v132
    // Predicated region
    $region22: #{tpu_custom_call.1} parent=1 // pred_check
      _
    $region23: #{tpu_custom_call.1} parent=1 // pred_check_branch
      %137 = sbr.rel (0) target = $region25
    $region24: #{tpu_custom_call.1} parent=1 // pred_region
      %s139 = ssub.s32 64, 64
      %140 = vsyncadd [#allocation4], %s139
      %s142 = sshll.u32 [#allocation7], 4
      %s143 = int_to_ptr.vmem [resolvable:$true] %s142
      %145 = dma.vmem_to_hbm [thread:$0]  %s143, 64, %s3, [#allocation4]
    $region25: #{tpu_custom_call.1} parent=1 // pred_fallthru
      _
    // Predicated region
    $region26: #{tpu_custom_call.1} parent=1 // pred_check
      _
    $region27: #{tpu_custom_call.1} parent=1 // pred_check_branch
      %147 = sbr.rel (0) target = $region29
    $region28: #{tpu_custom_call.1} parent=1 // pred_region
      %148 = dma.done [#allocation4], 64
    $region29: #{tpu_custom_call.1} parent=1 // pred_fallthru
      _
    %149 = vsyncpa [#allocation3], 1
    %150 = vsyncpa [#allocation6], 1
    %151 = vsyncpa [#allocation4], 1

</llo_original>
